<compile_context>
chip_gen: v5e
topology: v5e:2x2
jax: 0.10.0
libtpu: 0.0.40
codegen_flags: <defaults>
</compile_context>

<pallas_src>
import jax
import jax.numpy as jnp
import numpy as np
from jax.experimental import pallas as pl
from jax.experimental.pallas import tpu as pltpu


def _round_up(x, m):
    return ((x + m - 1) // m) * m


# ----------------------------- Pallas kernel -----------------------------

def _fused_backbone_head_kernel(p_ref, cw_ref, cb_ref, fw_ref, fb_ref,
                                o_ref, acc_ref):
    # p_ref : (1, TILE_HW, KKC) bf16  im2col patch row-tile of one image
    # cw_ref: (KKC, C_FEAT)     bf16  frozen conv weight (unpadded K=9*Cin)
    # cb_ref: (1, C_FEAT)       f32   frozen conv bias
    # fw_ref: (C_FEAT, NC_PAD)  f32   new head weight, pre-scaled by 1/(H*W)
    # fb_ref: (1, NC_PAD)       f32   new head bias (zero-padded lanes)
    # o_ref : (8, NC_PAD)       f32   lane/sublane-dense logits block (image n)
    # acc_ref: VMEM (8, C_FEAT) f32   per-sublane partial pooled sums
    t = pl.program_id(1)
    nt = pl.num_programs(1)

    # start of a new image: zero the pooled-sum accumulator
    @pl.when(t == 0)
    def _zero():
        acc_ref[...] = jnp.zeros_like(acc_ref)

    # frozen backbone tile: conv-as-matmul (bf16 MXU operands, f32 accumulate)
    feat = jnp.dot(p_ref[0], cw_ref[...], preferred_element_type=jnp.float32)
    feat = jnp.maximum(feat + cb_ref[...], 0.0)          # f32 epilogue (VPU)
    # global-average-pool as VPU-only partial sums: (tile, C) -> (tile/8, 8, C)
    # summed over the leading axis = plain vreg adds; no per-tile XLU reduce.
    acc_ref[...] += feat.reshape(-1, 8, feat.shape[-1]).sum(axis=0)

    # last row-tile of this image: apply the new classification head
    @pl.when(t == nt - 1)
    def _finalize():
        # single 8->1 cross-sublane reduce per image (XLU, once)
        pooled = jnp.sum(acc_ref[...], axis=0, keepdims=True)
        logits = jnp.dot(pooled, fw_ref[...],
                         preferred_element_type=jnp.float32) + fb_ref[...]
        # broadcast to all 8 sublanes -> full, unmasked (8, 128) store
        o_ref[...] = jnp.broadcast_to(logits, o_ref.shape)


# --------------------------- pallas_call wrapper ---------------------------

def fused_backbone_head(patches, conv_w, conv_b, fc_w, fc_b, *, tile_hw):
    """patches: (N, HW, 9*Cin) bf16. Returns (N, NC_PAD) padded f32 logits."""
    N, HW, KKC = patches.shape
    CF = conv_w.shape[1]
    NCP = fc_w.shape[1]
    assert HW % tile_hw == 0 and tile_hw % 8 == 0
    n_tiles = HW // tile_hw

    # patch stream: default double-buffering for toy tile counts; deeper
    # (Buffered(3)) when there are enough row-tiles to hide the exposed DMA.
    patch_map = lambda n, t: (n, t, 0)
    if n_tiles >= 3:
        patch_spec = pl.BlockSpec((1, tile_hw, KKC), patch_map,
                                  pipeline_mode=pl.Buffered(3))
        n_patch_bufs = 3
    else:
        patch_spec = pl.BlockSpec((1, tile_hw, KKC), patch_map)
        n_patch_bufs = 2

    # explicit VMEM budget: size from the real buffered tiles instead of the
    # 16/32 MiB scoped defaults; cap at v7x's 64 MiB physical VMEM.
    p_item = patches.dtype.itemsize
    w_item = conv_w.dtype.itemsize
    vmem_needed = (n_patch_bufs * tile_hw * KKC * p_item
                   + 2 * (conv_w.size * w_item
                          + 4 * (conv_b.size + fc_w.size + fc_b.size)
                          + 4 * 8 * NCP)
                   + 4 * 8 * CF)
    vmem_limit = min(max(int(1.5 * vmem_needed) + (2 << 20), 32 << 20),
                     64 << 20)

    flops = 2 * N * HW * KKC * CF + 2 * N * HW * CF + 2 * N * CF * NCP
    bytes_accessed = (patches.size * p_item + conv_w.size * w_item
                      + 4 * (conv_b.size + fc_w.size + fc_b.size
                             + N * 8 * NCP))

    out = pl.pallas_call(
        _fused_backbone_head_kernel,
        out_shape=jax.ShapeDtypeStruct((N * 8, NCP), jnp.float32),
        grid_spec=pltpu.PrefetchScalarGridSpec(
            num_scalar_prefetch=0,
            grid=(N, n_tiles),
            in_specs=[
                patch_spec,
                pl.BlockSpec((KKC, CF), lambda n, t: (0, 0)),
                pl.BlockSpec((1, CF), lambda n, t: (0, 0)),
                pl.BlockSpec((CF, NCP), lambda n, t: (0, 0)),
                pl.BlockSpec((1, NCP), lambda n, t: (0, 0)),
            ],
            out_specs=pl.BlockSpec((8, NCP), lambda n, t: (n, 0)),
            scratch_shapes=[pltpu.VMEM((8, CF), jnp.float32)],
        ),
        compiler_params=pltpu.CompilerParams(
            dimension_semantics=("parallel", "arbitrary"),
            vmem_limit_bytes=vmem_limit),
        cost_estimate=pl.CostEstimate(
            flops=int(flops), transcendentals=0,
            bytes_accessed=int(bytes_accessed)),
    )(patches, conv_w, conv_b, fc_w, fc_b)

    # one meaningful row per image (all 8 sublanes are identical)
    return out.reshape(N, 8, NCP)[:, 0, :]


# ------------------------------ JAX glue ------------------------------

def _im2col_3x3_same(x_nhwc):
    """3x3 'same' patches, tap order (kh, kw, cin). Returns (N, H*W, 9*C).
    Single concat materialization (no separate pad-of-patches pass)."""
    N, H, W, C = x_nhwc.shape
    xp = jnp.pad(x_nhwc, ((0, 0), (1, 1), (1, 1), (0, 0)))
    cols = [xp[:, di:di + H, dj:dj + W, :] for di in range(3) for dj in range(3)]
    return jnp.concatenate(cols, axis=-1).reshape(N, H * W, 9 * C)


def init_params(key, c_in, c_feat, num_classes):
    k1, k2, k3, k4 = jax.random.split(key, 4)
    # frozen backbone conv, flattened [kh*kw*Cin, Cout]
    conv_w = (jax.random.normal(k1, (3, 3, c_in, c_feat), jnp.float32)
              * (1.0 / np.sqrt(9 * c_in))).reshape(9 * c_in, c_feat)
    conv_b = jax.random.normal(k2, (1, c_feat), jnp.float32) * 0.01
    # new trainable head: nn.Linear(in_features=c_feat, NUM_CLASSES)
    fc_w = (jax.random.normal(k3, (c_feat, num_classes), jnp.float32)
            * (1.0 / np.sqrt(c_feat)))
    fc_b = jax.random.normal(k4, (1, num_classes), jnp.float32) * 0.01
    return {"conv_w": conv_w, "conv_b": conv_b, "fc_w": fc_w, "fc_b": fc_b}


@jax.jit
def transfer_learning_forward(x_nchw, params):
    """Forward of TransferLearningEntry: frozen backbone -> new Linear head.
    x_nchw: (N, C, H, W) float32 (PyTorch layout). Returns (N, NUM_CLASSES)."""
    x = jnp.transpose(x_nchw, (0, 2, 3, 1)).astype(jnp.float32)   # NCHW -> NHWC
    N, H, W, C = x.shape
    HW = H * W
    num_classes = params["fc_w"].shape[1]
    NCP = _round_up(num_classes, 128)        # lane-dense logits block only

    # bf16 MXU operands, contraction dim left UNPADDED (9*Cin) in HBM.
    patches = _im2col_3x3_same(x.astype(jnp.bfloat16))    # (N, HW, 9C) bf16
    conv_w = params["conv_w"].astype(jnp.bfloat16)
    conv_b = params["conv_b"]                              # f32 epilogue
    # fold the 1/(H*W) global-average-pool scale into the head weight (f32)
    fc_w = jnp.pad(params["fc_w"] * (1.0 / HW),
                   ((0, 0), (0, NCP - num_classes)))
    fc_b = jnp.pad(params["fc_b"], ((0, 0), (0, NCP - num_classes)))

    assert HW % 8 == 0
    # row-tile: 128 rows for the toy size. For real backbones use >= 512 rows
    # (v5e/v6e) and size against 64 MiB VMEM on v7x (bf16 patches keep the
    # v6e tile size; f32 would need half).
    tile_hw = 128 if HW % 128 == 0 else HW

    logits_pad = fused_backbone_head(patches, conv_w, conv_b, fc_w, fc_b,
                                     tile_hw=tile_hw)               # (N, NCP)
    return logits_pad[:, :num_classes]


def _reference_forward(x_nchw, params):
    # Mirrors the kernel numerics: bf16 conv operands (the intended perf
    # deviation from the pure-f32 module), f32 accumulation / bias / ReLU /
    # pool / head.
    x = jnp.transpose(x_nchw, (0, 2, 3, 1)).astype(jnp.float32)
    patches = _im2col_3x3_same(x.astype(jnp.bfloat16))              # (N,HW,9C)
    feat = jnp.einsum("npk,kc->npc", patches,
                      params["conv_w"].astype(jnp.bfloat16),
                      preferred_element_type=jnp.float32)
    feat = jnp.maximum(feat + params["conv_b"], 0.0)
    pooled = feat.mean(axis=1)
    return pooled @ params["fc_w"] + params["fc_b"]


if __name__ == "__main__":
    # Small, consistent shapes: batch=2, channels=4, spatial=16x16,
    # backbone feature width=128, NUM_CLASSES=8.
    N, C_IN, H, W = 2, 4, 16, 16
    C_FEAT, NUM_CLASSES = 128, 8

    key = jax.random.PRNGKey(0)
    kx, kp = jax.random.split(key)
    x = jax.random.normal(kx, (N, C_IN, H, W), jnp.float32)
    params = init_params(kp, C_IN, C_FEAT, NUM_CLASSES)

    logits = transfer_learning_forward(x, params)
    logits = jax.block_until_ready(logits)

    ref = _reference_forward(x, params)
    np.testing.assert_allclose(np.asarray(logits), np.asarray(ref),
                               rtol=1e-3, atol=1e-3)
    assert logits.shape == (N, NUM_CLASSES)
    print("KERNEL_OK")
</pallas_src>

<mosaic_0001>
module attributes {stable_mosaic.version = 11 : i64} {
  func.func @_fused_backbone_head_kernel(%arg0: i32, %arg1: i32, %arg2: memref<1x128x36xbf16, #tpu.memory_space<vmem>>, %arg3: memref<36x128xbf16, #tpu.memory_space<vmem>>, %arg4: memref<1x128xf32, #tpu.memory_space<vmem>>, %arg5: memref<128x128xf32, #tpu.memory_space<vmem>>, %arg6: memref<1x128xf32, #tpu.memory_space<vmem>>, %arg7: memref<8x128xf32, #tpu.memory_space<vmem>>, %arg8: memref<8x128xf32, #tpu.memory_space<vmem>>) attributes {dimension_semantics = [#tpu.dimension_semantics<parallel>, #tpu.dimension_semantics<arbitrary>], iteration_bounds = array<i64: 2, 2>, scalar_prefetch = 0 : i64, scratch_operands = 1 : i64, tpu.core_type = #tpu.core_type<tc>, window_params = [{transform_indices = @transform_0, window_bounds = array<i64: 1, 128, 36>}, {pipeline_mode = #tpu.pipeline_mode<synchronous>, transform_indices = @transform_1, window_bounds = array<i64: 36, 128>}, {pipeline_mode = #tpu.pipeline_mode<synchronous>, transform_indices = @transform_2, window_bounds = array<i64: 1, 128>}, {pipeline_mode = #tpu.pipeline_mode<synchronous>, transform_indices = @transform_3, window_bounds = array<i64: 128, 128>}, {pipeline_mode = #tpu.pipeline_mode<synchronous>, transform_indices = @transform_4, window_bounds = array<i64: 1, 128>}, {transform_indices = @transform_5, window_bounds = array<i64: 8, 128>}]} {
    %c0_i32 = arith.constant 0 : i32
    %0 = arith.cmpi eq, %arg1, %c0_i32 : i32
    %1 = arith.extui %0 : i1 to i32
    %c0_i32_0 = arith.constant 0 : i32
    %2 = arith.cmpi ne, %1, %c0_i32_0 : i32
    scf.if %2 {
      %cst_14 = arith.constant 0.000000e+00 : f32
      %20 = vector.broadcast %cst_14 : f32 to vector<8x128xf32>
      %c0_15 = arith.constant 0 : index
      %c0_16 = arith.constant 0 : index
      %21 = vector.load %arg8[%c0_15, %c0_16] : memref<8x128xf32, #tpu.memory_space<vmem>>, vector<8x128xf32>
      tpu.vector_store %arg8[%c0_15, %c0_16], %20 {strides = array<i32>} : memref<8x128xf32, #tpu.memory_space<vmem>>, vector<8x128xf32>,
    } else {
    }
    %c0 = arith.constant 0 : index
    %c0_1 = arith.constant 0 : index
    %c0_2 = arith.constant 0 : index
    %3 = vector.load %arg2[%c0, %c0_1, %c0_2] : memref<1x128x36xbf16, #tpu.memory_space<vmem>>, vector<1x128x36xbf16>
    %4 = vector.shape_cast %3 : vector<1x128x36xbf16> to vector<128x36xbf16>
    %c0_3 = arith.constant 0 : index
    %c0_4 = arith.constant 0 : index
    %5 = vector.load %arg3[%c0_3, %c0_4] : memref<36x128xbf16, #tpu.memory_space<vmem>>, vector<36x128xbf16>
    %cst = arith.constant dense<0.000000e+00> : vector<128x128xf32>
    %6 = tpu.matmul %4, %5, %cst {dimension_numbers = #tpu.dot_dimension_numbers<[1], [0], [0], [1], [0, 0, 1, 1], [], []>} : vector<128x36xbf16>, vector<36x128xbf16>, vector<128x128xf32> -> vector<128x128xf32>
    %c0_5 = arith.constant 0 : index
    %c0_6 = arith.constant 0 : index
    %7 = vector.load %arg4[%c0_5, %c0_6] : memref<1x128xf32, #tpu.memory_space<vmem>>, vector<1x128xf32>
    %8 = vector.broadcast %7 : vector<1x128xf32> to vector<128x128xf32>
    %9 = arith.addf %6, %8 : vector<128x128xf32>
    %cst_7 = arith.constant 0.000000e+00 : f32
    %10 = vector.broadcast %cst_7 : f32 to vector<128x128xf32>
    %11 = arith.maximumf %9, %10 : vector<128x128xf32>
    %c0_8 = arith.constant 0 : index
    %c0_9 = arith.constant 0 : index
    %12 = vector.load %arg8[%c0_8, %c0_9] : memref<8x128xf32, #tpu.memory_space<vmem>>, vector<8x128xf32>
    %13 = vector.shape_cast %11 : vector<128x128xf32> to vector<16x8x128xf32>
    %cst_10 = arith.constant dense<0.000000e+00> : vector<8x128xf32>
    %14 = vector.multi_reduction <add>, %13, %cst_10 [0] : vector<16x8x128xf32> to vector<8x128xf32>
    %15 = arith.addf %12, %14 : vector<8x128xf32>
    %c0_11 = arith.constant 0 : index
    %c0_12 = arith.constant 0 : index
    %16 = vector.load %arg8[%c0_11, %c0_12] : memref<8x128xf32, #tpu.memory_space<vmem>>, vector<8x128xf32>
    tpu.vector_store %arg8[%c0_11, %c0_12], %15 {strides = array<i32>} : memref<8x128xf32, #tpu.memory_space<vmem>>, vector<8x128xf32>,
    %c1_i32 = arith.constant 1 : i32
    %17 = arith.cmpi eq, %arg1, %c1_i32 : i32
    %18 = arith.extui %17 : i1 to i32
    %c0_i32_13 = arith.constant 0 : i32
    %19 = arith.cmpi ne, %18, %c0_i32_13 : i32
    scf.if %19 {
      %c0_14 = arith.constant 0 : index
      %c0_15 = arith.constant 0 : index
      %20 = vector.load %arg8[%c0_14, %c0_15] : memref<8x128xf32, #tpu.memory_space<vmem>>, vector<8x128xf32>
      %cst_16 = arith.constant dense<0.000000e+00> : vector<128xf32>
      %21 = vector.multi_reduction <add>, %20, %cst_16 [0] : vector<8x128xf32> to vector<128xf32>
      %22 = vector.shape_cast %21 : vector<128xf32> to vector<1x128xf32>
      %c0_17 = arith.constant 0 : index
      %c0_18 = arith.constant 0 : index
      %23 = vector.load %arg5[%c0_17, %c0_18] : memref<128x128xf32, #tpu.memory_space<vmem>>, vector<128x128xf32>
      %cst_19 = arith.constant dense<0.000000e+00> : vector<1x128xf32>
      %24 = tpu.matmul %22, %23, %cst_19 {dimension_numbers = #tpu.dot_dimension_numbers<[1], [0], [0], [1], [0, 0, 1, 1], [], []>} : vector<1x128xf32>, vector<128x128xf32>, vector<1x128xf32> -> vector<1x128xf32>
      %c0_20 = arith.constant 0 : index
      %c0_21 = arith.constant 0 : index
      %25 = vector.load %arg6[%c0_20, %c0_21] : memref<1x128xf32, #tpu.memory_space<vmem>>, vector<1x128xf32>
      %26 = arith.addf %24, %25 : vector<1x128xf32>
      %27 = vector.shape_cast %26 : vector<1x128xf32> to vector<1x128xf32>
      %28 = vector.broadcast %27 : vector<1x128xf32> to vector<8x128xf32>
      %c0_22 = arith.constant 0 : index
      %c0_23 = arith.constant 0 : index
      %29 = vector.load %arg7[%c0_22, %c0_23] : memref<8x128xf32, #tpu.memory_space<vmem>>, vector<8x128xf32>
      tpu.vector_store %arg7[%c0_22, %c0_23], %28 {strides = array<i32>} : memref<8x128xf32, #tpu.memory_space<vmem>>, vector<8x128xf32>,
    } else {
    }
    return
  }
  func.func @transform_0(%arg0: i32, %arg1: i32) -> (i32, i32, i32) {
    %c0_i32 = arith.constant 0 : i32
    %c0_i32_0 = arith.constant 0 : i32
    return %arg0, %arg1, %c0_i32 : i32, i32, i32
  }
  func.func @transform_1(%arg0: i32, %arg1: i32) -> (i32, i32) {
    %c0_i32 = arith.constant 0 : i32
    %c0_i32_0 = arith.constant 0 : i32
    %c0_i32_1 = arith.constant 0 : i32
    return %c0_i32, %c0_i32_0 : i32, i32
  }
  func.func @transform_2(%arg0: i32, %arg1: i32) -> (i32, i32) {
    %c0_i32 = arith.constant 0 : i32
    %c0_i32_0 = arith.constant 0 : i32
    %c0_i32_1 = arith.constant 0 : i32
    return %c0_i32, %c0_i32_0 : i32, i32
  }
  func.func @transform_3(%arg0: i32, %arg1: i32) -> (i32, i32) {
    %c0_i32 = arith.constant 0 : i32
    %c0_i32_0 = arith.constant 0 : i32
    %c0_i32_1 = arith.constant 0 : i32
    return %c0_i32, %c0_i32_0 : i32, i32
  }
  func.func @transform_4(%arg0: i32, %arg1: i32) -> (i32, i32) {
    %c0_i32 = arith.constant 0 : i32
    %c0_i32_0 = arith.constant 0 : i32
    %c0_i32_1 = arith.constant 0 : i32
    return %c0_i32, %c0_i32_0 : i32, i32
  }
  func.func @transform_5(%arg0: i32, %arg1: i32) -> (i32, i32) {
    %c0_i32 = arith.constant 0 : i32
    %c0_i32_0 = arith.constant 0 : i32
    return %arg0, %c0_i32 : i32, i32
  }
}

</mosaic_0001>

<llo_original>
// kernel: transfer_learning_forward.1
$region0: #{transfer_learning_forward.1}
  #allocation0 [shape = 'u32[]', space=smem, size = 0x4, offset = 0x4, fixed_abs, tag = 'smem constant byte address 0x4 - core index']
  #allocation1 [shape = 'u32[72,128]{1,0:T(1,128)}', space=vmem, size = 0x9000, scoped, tag = 'internal scratch']
  #allocation2 [shape = 'f32[8,128]{1,0:T(8,128)}', space=vmem, size = 0x1000, scoped, tag = 'scratch operand']
  %s0 = inlined_call_operand.vmem [shape: bf16[2,256,36], index: 0, kind: input, shape index: {}]
  %s1 = inlined_call_operand.vmem [shape: bf16[36,128], index: 1, kind: input, shape index: {}]
  %s2 = inlined_call_operand.vmem [shape: f32[1,128], index: 2, kind: input, shape index: {}]
  %s3 = inlined_call_operand.vmem [shape: f32[128,128], index: 3, kind: input, shape index: {}]
  %s4 = inlined_call_operand.vmem [shape: f32[1,128], index: 4, kind: input, shape index: {}]
  %s5 = inlined_call_operand.vmem [shape: f32[16,128], index: 5, kind: output, shape index: {}]
  %s6 = sld [smem:[#allocation0]]
  $region61: #{transfer_learning_forward.1} parent=0
    _
  %s8 = ssub.s32 1, %s6
  %s9 = scalar_select 0, %s8, %s6
  loop: start=0, step=1, limit=6
  $region2: #{transfer_learning_forward.1} parent=0 // loop_pre_header
    _
  $region3: #{transfer_learning_forward.1} parent=0 // loop_header
    %s11 = sphi 0, %s15
    %p12 = scmp.ge.s32.totalorder %s11, 6
    %s18 = sphi 0, %s30
    %s19 = sphi 0, %s26
    %s20 = sphi 0, %s18
    %s21 = sphi 0, %s19
    %s22 = sphi 0, %s20
    %s23 = sphi 0, %s21
    %s35 = sphi 0, %s37
    %s38 = sphi 0, %s35
    %s39 = sphi 0, %s38
    %s55 = sphi 0, %s39
    %s59 = sphi 0, %s59
    %s61 = sphi 0, %s59
    %s62 = sphi 0, %s61
    %s76 = sphi 0, %s62
    %s80 = sphi 0, %s80
    %s82 = sphi 0, %s80
    %s83 = sphi 0, %s82
    %s97 = sphi 0, %s83
    %s101 = sphi 0, %s101
    %s103 = sphi 0, %s101
    %s104 = sphi 0, %s103
    %s118 = sphi 0, %s104
    %s122 = sphi 0, %s122
    %s124 = sphi 0, %s122
    %s125 = sphi 0, %s124
    %s139 = sphi 0, %s125
    %s145 = sphi 0, %s147
    %s148 = sphi 0, %s145
    %s149 = sphi 0, %s148
    %s165 = sphi 0, %s149
  $region4: #{transfer_learning_forward.1} parent=0 // loop_header_branch
    %14 = sbr.rel (%p12) target = $region8
  $region5: #{transfer_learning_forward.1} parent=0 // loop_body
    %s16 = ssub.s32 %s11, 1
    %s17 = ssub.s32 %s11, 2
    %s24 = sadd.s32 1, %s19
    %p25 = scmp.ge.s32.totalorder %s24, 2
    %s26 = scalar_select %p25, 0, %s24
    %s27 = sadd.s32 1, %s18
    %s28 = scalar_select %p25, %s27, %s18
    %p29 = scmp.ge.s32.totalorder %s28, 2
    %s30 = scalar_select %p29, 0, %s28
    %s31 = ssub.s32 %s18, %s30
    %s32 = ssub.s32 %s19, %s26
    %s33 = sor.u32 %s31, %s32
    %p34 = scmp.eq.s32.totalorder %s33, 0
    %s36 = sadd.s32 %s35, 1
    %s37 = scalar_select %p34, %s35, %s36
    %p40 = pneg %p34
    %p41 = scmp.eq.s32.totalorder %s11, 3
    %p42 = por %p40, %p41
    %p43 = scmp.ne.s32.totalorder %s35, %s38
    %p44 = scmp.eq.s32.totalorder %s11, 0
    %p45 = por %p43, %p44
    %p46 = scmp.ne.s32.totalorder %s35, %s38
    %p47 = scmp.eq.s32.totalorder %s16, 3
    %p48 = por %p46, %p47
    %p49 = scmp.ne.s32.totalorder %s38, %s39
    %p50 = scmp.eq.s32.totalorder %s16, 0
    %p51 = por %p49, %p50
    %p52 = scmp.ne.s32.totalorder %s38, %s39
    %p53 = scmp.eq.s32.totalorder %s17, 3
    %p54 = por %p52, %p53
    %p56 = scmp.ne.s32.totalorder %s39, %s55
    %p57 = scmp.eq.s32.totalorder %s17, 0
    %p58 = por %p56, %p57
    %s60 = sadd.s32 %s59, 1
    %p63 = scmp.eq.s32.totalorder %s11, 3
    %p64 = scmp.ne.s32.totalorder %s59, %s61
    %p65 = scmp.eq.s32.totalorder %s11, 0
    %p66 = por %p64, %p65
    %p67 = scmp.ne.s32.totalorder %s59, %s61
    %p68 = scmp.eq.s32.totalorder %s16, 3
    %p69 = por %p67, %p68
    %p70 = scmp.ne.s32.totalorder %s61, %s62
    %p71 = scmp.eq.s32.totalorder %s16, 0
    %p72 = por %p70, %p71
    %p73 = scmp.ne.s32.totalorder %s61, %s62
    %p74 = scmp.eq.s32.totalorder %s17, 3
    %p75 = por %p73, %p74
    %p77 = scmp.ne.s32.totalorder %s62, %s76
    %p78 = scmp.eq.s32.totalorder %s17, 0
    %p79 = por %p77, %p78
    %s81 = sadd.s32 %s80, 1
    %p84 = scmp.eq.s32.totalorder %s11, 3
    %p85 = scmp.ne.s32.totalorder %s80, %s82
    %p86 = scmp.eq.s32.totalorder %s11, 0
    %p87 = por %p85, %p86
    %p88 = scmp.ne.s32.totalorder %s80, %s82
    %p89 = scmp.eq.s32.totalorder %s16, 3
    %p90 = por %p88, %p89
    %p91 = scmp.ne.s32.totalorder %s82, %s83
    %p92 = scmp.eq.s32.totalorder %s16, 0
    %p93 = por %p91, %p92
    %p94 = scmp.ne.s32.totalorder %s82, %s83
    %p95 = scmp.eq.s32.totalorder %s17, 3
    %p96 = por %p94, %p95
    %p98 = scmp.ne.s32.totalorder %s83, %s97
    %p99 = scmp.eq.s32.totalorder %s17, 0
    %p100 = por %p98, %p99
    %s102 = sadd.s32 %s101, 1
    %p105 = scmp.eq.s32.totalorder %s11, 3
    %p106 = scmp.ne.s32.totalorder %s101, %s103
    %p107 = scmp.eq.s32.totalorder %s11, 0
    %p108 = por %p106, %p107
    %p109 = scmp.ne.s32.totalorder %s101, %s103
    %p110 = scmp.eq.s32.totalorder %s16, 3
    %p111 = por %p109, %p110
    %p112 = scmp.ne.s32.totalorder %s103, %s104
    %p113 = scmp.eq.s32.totalorder %s16, 0
    %p114 = por %p112, %p113
    %p115 = scmp.ne.s32.totalorder %s103, %s104
    %p116 = scmp.eq.s32.totalorder %s17, 3
    %p117 = por %p115, %p116
    %p119 = scmp.ne.s32.totalorder %s104, %s118
    %p120 = scmp.eq.s32.totalorder %s17, 0
    %p121 = por %p119, %p120
    %s123 = sadd.s32 %s122, 1
    %p126 = scmp.eq.s32.totalorder %s11, 3
    %p127 = scmp.ne.s32.totalorder %s122, %s124
    %p128 = scmp.eq.s32.totalorder %s11, 0
    %p129 = por %p127, %p128
    %p130 = scmp.ne.s32.totalorder %s122, %s124
    %p131 = scmp.eq.s32.totalorder %s16, 3
    %p132 = por %p130, %p131
    %p133 = scmp.ne.s32.totalorder %s124, %s125
    %p134 = scmp.eq.s32.totalorder %s16, 0
    %p135 = por %p133, %p134
    %p136 = scmp.ne.s32.totalorder %s124, %s125
    %p137 = scmp.eq.s32.totalorder %s17, 3
    %p138 = por %p136, %p137
    %p140 = scmp.ne.s32.totalorder %s125, %s139
    %p141 = scmp.eq.s32.totalorder %s17, 0
    %p142 = por %p140, %p141
    %s143 = ssub.s32 %s18, %s30
    %p144 = scmp.eq.s32.totalorder %s143, 0
    %s146 = sadd.s32 %s145, 1
    %s147 = scalar_select %p144, %s145, %s146
    %p150 = pneg %p144
    %p151 = scmp.eq.s32.totalorder %s11, 3
    %p152 = por %p150, %p151
    %p153 = scmp.ne.s32.totalorder %s145, %s148
    %p154 = scmp.eq.s32.totalorder %s11, 0
    %p155 = por %p153, %p154
    %p156 = scmp.ne.s32.totalorder %s145, %s148
    %p157 = scmp.eq.s32.totalorder %s16, 3
    %p158 = por %p156, %p157
    %p159 = scmp.ne.s32.totalorder %s148, %s149
    %p160 = scmp.eq.s32.totalorder %s16, 0
    %p161 = por %p159, %p160
    %p162 = scmp.ne.s32.totalorder %s148, %s149
    %p163 = scmp.eq.s32.totalorder %s17, 3
    %p164 = por %p162, %p163
    %p166 = scmp.ne.s32.totalorder %s149, %s165
    %p167 = scmp.eq.s32.totalorder %s17, 0
    %p168 = por %p166, %p167
    %p169 = scmp.le.s32.totalorder 1, %s11
    %p170 = scmp.lt.s32.totalorder %s11, 5
    %p171 = pnand %p169, %p170
    %p172 = pneg %p171
    // Predicated region
    $region9: #{transfer_learning_forward.1} parent=5 // pred_check
      _
    $region10: #{transfer_learning_forward.1} parent=5 // pred_check_branch
      %174 = sbr.rel (%p171) target = $region12
    $region11: #{transfer_learning_forward.1} parent=5 // pred_region
      %s175 = ssub.s32 %s11, 1
      // Predicated region
      $region13: #{transfer_learning_forward.1} parent=11 // pred_check
        %p176 = pneg %p72
      $region14: #{transfer_learning_forward.1} parent=11 // pred_check_branch
        %178 = sbr.rel (%p176) target = $region16
      $region15: #{transfer_learning_forward.1} parent=11 // pred_region
        _
      $region16: #{transfer_learning_forward.1} parent=11 // pred_fallthru
        _
      // Predicated region
      $region17: #{transfer_learning_forward.1} parent=11 // pred_check
        %p179 = pneg %p93
      $region18: #{transfer_learning_forward.1} parent=11 // pred_check_branch
        %181 = sbr.rel (%p179) target = $region20
      $region19: #{transfer_learning_forward.1} parent=11 // pred_region
        _
      $region20: #{transfer_learning_forward.1} parent=11 // pred_fallthru
        _
      // Predicated region
      $region21: #{transfer_learning_forward.1} parent=11 // pred_check
        %p182 = pneg %p114
      $region22: #{transfer_learning_forward.1} parent=11 // pred_check_branch
        %184 = sbr.rel (%p182) target = $region24
      $region23: #{transfer_learning_forward.1} parent=11 // pred_region
        _
      $region24: #{transfer_learning_forward.1} parent=11 // pred_fallthru
        _
      // Predicated region
      $region25: #{transfer_learning_forward.1} parent=11 // pred_check
        %p185 = pneg %p135
      $region26: #{transfer_learning_forward.1} parent=11 // pred_check_branch
        %187 = sbr.rel (%p185) target = $region28
      $region27: #{transfer_learning_forward.1} parent=11 // pred_region
        _
      $region28: #{transfer_learning_forward.1} parent=11 // pred_fallthru
        _
    $region12: #{transfer_learning_forward.1} parent=5 // pred_fallthru
      _
    %p188 = scmp.lt.s32.totalorder %s11, 4
    // Predicated region
    $region29: #{transfer_learning_forward.1} parent=5 // pred_check
      %p189 = pneg %p188
    $region30: #{transfer_learning_forward.1} parent=5 // pred_check_branch
      %191 = sbr.rel (%p189) target = $region32
    $region31: #{transfer_learning_forward.1} parent=5 // pred_region
      // Predicated region
      $region33: #{transfer_learning_forward.1} parent=31 // pred_check
        %p192 = pneg %p45
      $region34: #{transfer_learning_forward.1} parent=31 // pred_check_branch
        %194 = sbr.rel (%p192) target = $region36
      $region35: #{transfer_learning_forward.1} parent=31 // pred_region
        %s195 = smul.u32 16, %s19
        %p196 = scmp.lt.s32.totalorder %s18, 1
        %s197 = scalar_select %p196, %s18, 1
        %p198 = scmp.lt.s32.totalorder %s195, 31
        %s199 = scalar_select %p198, %s195, 31
        %s200 = smul.addr %s197, 32
        %s201 = sadd.s32 %s199, %s200
        %s202 = smul.addr %s201, 4
        %s203 = scalar_lea.vmem %s0, %s202
        %s204 = smul.u32 16, %s19
      $region36: #{transfer_learning_forward.1} parent=31 // pred_fallthru
        _
    $region32: #{transfer_learning_forward.1} parent=5 // pred_fallthru
      _
    %p205 = scmp.le.s32.totalorder 1, %s11
    %p206 = scmp.lt.s32.totalorder %s11, 5
    %p207 = pnand %p205, %p206
    %p208 = pneg %p207
    // Predicated region
    $region37: #{transfer_learning_forward.1} parent=5 // pred_check
      _
    $region38: #{transfer_learning_forward.1} parent=5 // pred_check_branch
      %210 = sbr.rel (%p207) target = $region40
    $region39: #{transfer_learning_forward.1} parent=5 // pred_region
      %s211 = ssub.s32 %s11, 1
      %s212 = smul.u32 16, %s21
      %p213 = scmp.lt.s32.totalorder %s20, 1
      %s214 = scalar_select %p213, %s20, 1
      %p215 = scmp.lt.s32.totalorder %s212, 31
      %s216 = scalar_select %p215, %s212, 31
      %s217 = smul.addr %s214, 32
      %s218 = sadd.s32 %s216, %s217
      %s219 = smul.addr %s218, 4
      %s220 = scalar_lea.vmem %s0, %s219
      %p221 = pneg %p51
      %p222 = pneg %p48
      %p223 = pneg %p72
      %p224 = pneg %p69
      %p225 = pneg %p93
      %p226 = pneg %p90
      %p227 = pneg %p114
      %p228 = pneg %p111
      %p229 = pneg %p135
      %p230 = pneg %p132
      %p231 = pneg %p161
      %p232 = pneg %p158
      %p233 = scmp.lt.s32.totalorder %s20, 1
      %s234 = scalar_select %p233, %s20, 1
      %s235 = smul.addr %s234, 8
      %s236 = scalar_lea.vmem %s5, %s235
      %s237 = smul.u32 16, %s21
      %p238 = scmp.lt.s32.totalorder %s20, 1
      %s239 = scalar_select %p238, %s20, 1
      %p240 = scmp.lt.s32.totalorder %s237, 31
      %s241 = scalar_select %p240, %s237, 31
      %s242 = smul.addr %s239, 32
      %s243 = sadd.s32 %s241, %s242
      %s244 = smul.addr %s243, 4
      %s245 = scalar_lea.vmem %s0, %s244
      %s246 = smul.u32 16, %s21
      %p247 = scmp.lt.s32.totalorder %s20, 1
      %s248 = scalar_select %p247, %s20, 1
      %s249 = smul.addr %s248, 8
      %s250 = scalar_lea.vmem %s5, %s249
      %p252 = scmp.eq.s32.totalorder %s21, 0
      // Predicated region
      $region41: #{transfer_learning_forward.1} parent=39 // pred_check
        %p253 = pneg %p252
      $region42: #{transfer_learning_forward.1} parent=39 // pred_check_branch
        %255 = sbr.rel (%p253) target = $region44
      $region43: #{transfer_learning_forward.1} parent=39 // pred_region
        %256 = vst [vmem:[#allocation2] sm:$0xff] 0.0
      $region44: #{transfer_learning_forward.1} parent=39 // pred_fallthru
        _
      %v257 = vld [vmem:[%s245] sm:$0xf]
      %v258 = vld [vmem:[%s245 + $0x4] sm:$0xf]
      %v259 = vld [vmem:[%s245 + $0x8] sm:$0xf]
      %v260 = vld [vmem:[%s245 + $0xc] sm:$0xf]
      %v261 = vld [vmem:[%s245 + $0x10] sm:$0xf]
      %v262 = vld [vmem:[%s245 + $0x14] sm:$0xf]
      %v263 = vld [vmem:[%s245 + $0x18] sm:$0xf]
      %v264 = vld [vmem:[%s245 + $0x1c] sm:$0xf]
      %v265 = vld [vmem:[%s245 + $0x20] sm:$0xf]
      %v266 = vld [vmem:[%s245 + $0x24] sm:$0xf]
      %v267 = vld [vmem:[%s245 + $0x28] sm:$0xf]
      %v268 = vld [vmem:[%s245 + $0x2c] sm:$0xf]
      %v269 = vld [vmem:[%s245 + $0x30] sm:$0xf]
      %v270 = vld [vmem:[%s245 + $0x34] sm:$0xf]
      %v271 = vld [vmem:[%s245 + $0x38] sm:$0xf]
      %v272 = vld [vmem:[%s245 + $0x3c] sm:$0xf]
      %v273 = vld [vmem:[%s1] sm:$0xf]
      %v274 = vld [vmem:[%s1 + $0x4] sm:$0xf]
      %v275 = vld [vmem:[%s1 + $0x8] sm:$0xf]
      %v276 = vld [vmem:[%s1 + $0xc] sm:$0xf]
      %v277 = vld [vmem:[%s1 + $0x10] sm:$0x3]
      %v278 = vld [vmem:[%s2] sm:$0x1]
      %v280 = vperm.slane %v278, 0
      %v298 = vunpack.c.l.b16 %v257
      %v299 = vunpack.c.l.b16 %v258
      %v300 = vunpack.c.l.b16 %v259
      %v301 = vunpack.c.l.b16 %v260
      %v302 = vunpack.c.l.b16 %v261
      %v303 = vunpack.c.l.b16 %v262
      %v304 = vunpack.c.l.b16 %v263
      %v305 = vunpack.c.l.b16 %v264
      %v306 = vunpack.c.l.b16 %v265
      %v307 = vunpack.c.l.b16 %v266
      %v308 = vunpack.c.l.b16 %v267
      %v309 = vunpack.c.l.b16 %v268
      %v310 = vunpack.c.l.b16 %v269
      %v311 = vunpack.c.l.b16 %v270
      %v312 = vunpack.c.l.b16 %v271
      %v313 = vunpack.c.l.b16 %v272
      %v314 = vpack.c.b16 %v299, %v298
      %v315 = vpack.c.b16 %v301, %v300
      %v316 = vpack.c.b16 %v303, %v302
      %v317 = vpack.c.b16 %v305, %v304
      %v318 = vpack.c.b16 %v307, %v306
      %v319 = vpack.c.b16 %v309, %v308
      %v320 = vpack.c.b16 %v311, %v310
      %v321 = vpack.c.b16 %v313, %v312
      %v327 = vunpack.c.l.b16 %v273
      %v328 = vunpack.c.l.b16 %v274
      %v329 = vunpack.c.l.b16 %v275
      %v330 = vunpack.c.l.b16 %v276
      %v331 = vunpack.c.l.b16 %v277
      %v332 = vpack.c.b16 %v328, %v327
      %v333 = vpack.c.b16 %v330, %v329
      %v334 = vpack.c.b16 %v331, %v331
      %vm337 = vcmask 293888
      %v339 = vsel %vm337, %v314, 0
      %v342 = vsel %vm337, %v315, 0
      %v345 = vsel %vm337, %v316, 0
      %v348 = vsel %vm337, %v317, 0
      %v351 = vsel %vm337, %v318, 0
      %v354 = vsel %vm337, %v319, 0
      %v357 = vsel %vm337, %v320, 0
      %v360 = vsel %vm337, %v321, 0
      %vm362 = vcmask 1041408
      %v364 = vsel %vm362, %v334, 0
      %366 = vmatpush.bf16.msra.mxu0 0
      %367 = vmatpush.bf16.msra.mxu0 0
      %368 = vmatpush.bf16.msra.mxu0 0
      %369 = vmatpush.bf16.msra.mxu0 0
      %370 = vmatpush.bf16.msra.mxu0 0
      %371 = vmatpush.bf16.msra.mxu0 %v364
      %372 = vmatpush.bf16.msra.mxu0 %v333
      %373 = vmatpush.bf16.msra.mxu0 %v332
      %374 = vmatmul.bf16.gmra.mxu0 %v339
      %v375 = vpop.f32.mrf.mxu0
      %v376 = vadd.f32 %v280, %v375
      %v377 = vpop.f32.mrf.mxu0
      %v378 = vadd.f32 %v280, %v377
      %379 = vmatmul.bf16.gmra.mxu0 %v342
      %v380 = vpop.f32.mrf.mxu0
      %v381 = vadd.f32 %v280, %v380
      %v382 = vpop.f32.mrf.mxu0
      %v383 = vadd.f32 %v280, %v382
      %384 = vmatmul.bf16.gmra.mxu0 %v345
      %v385 = vpop.f32.mrf.mxu0
      %v386 = vadd.f32 %v280, %v385
      %v387 = vpop.f32.mrf.mxu0
      %v388 = vadd.f32 %v280, %v387
      %389 = vmatmul.bf16.gmra.mxu0 %v348
      %v390 = vpop.f32.mrf.mxu0
      %v391 = vadd.f32 %v280, %v390
      %v392 = vpop.f32.mrf.mxu0
      %v393 = vadd.f32 %v280, %v392
      %394 = vmatmul.bf16.gmra.mxu0 %v351
      %v395 = vpop.f32.mrf.mxu0
      %v396 = vadd.f32 %v280, %v395
      %v397 = vpop.f32.mrf.mxu0
      %v398 = vadd.f32 %v280, %v397
      %399 = vmatmul.bf16.gmra.mxu0 %v354
      %v400 = vpop.f32.mrf.mxu0
      %v401 = vadd.f32 %v280, %v400
      %v402 = vpop.f32.mrf.mxu0
      %v403 = vadd.f32 %v280, %v402
      %404 = vmatmul.bf16.gmra.mxu0 %v357
      %v405 = vpop.f32.mrf.mxu0
      %v406 = vadd.f32 %v280, %v405
      %v407 = vpop.f32.mrf.mxu0
      %v408 = vadd.f32 %v280, %v407
      %409 = vmatmul.bf16.gmra.mxu0 %v360
      %v410 = vpop.f32.mrf.mxu0
      %v411 = vadd.f32 %v280, %v410
      %v412 = vpop.f32.mrf.mxu0
      %v413 = vadd.f32 %v280, %v412
      %414 = vdwg.mxu0
      %v415 = vmax.f32 %v376, 0.0
      %v416 = vmax.f32 %v378, 0.0
      %v417 = vmax.f32 %v381, 0.0
      %v418 = vmax.f32 %v383, 0.0
      %v419 = vmax.f32 %v386, 0.0
      %v420 = vmax.f32 %v388, 0.0
      %v421 = vmax.f32 %v391, 0.0
      %v422 = vmax.f32 %v393, 0.0
      %v423 = vmax.f32 %v396, 0.0
      %v424 = vmax.f32 %v398, 0.0
      %v425 = vmax.f32 %v401, 0.0
      %v426 = vmax.f32 %v403, 0.0
      %v427 = vmax.f32 %v406, 0.0
      %v428 = vmax.f32 %v408, 0.0
      %v429 = vmax.f32 %v411, 0.0
      %v430 = vmax.f32 %v413, 0.0
      %v431 = vld [vmem:[#allocation2] sm:$0xff]
      %v432 = vadd.f32 %v415, %v416
      %v433 = vadd.f32 %v432, %v417
      %v434 = vadd.f32 %v433, %v418
      %v435 = vadd.f32 %v434, %v419
      %v436 = vadd.f32 %v435, %v420
      %v437 = vadd.f32 %v436, %v421
      %v438 = vadd.f32 %v437, %v422
      %v439 = vadd.f32 %v438, %v423
      %v440 = vadd.f32 %v439, %v424
      %v441 = vadd.f32 %v440, %v425
      %v442 = vadd.f32 %v441, %v426
      %v443 = vadd.f32 %v442, %v427
      %v444 = vadd.f32 %v443, %v428
      %v445 = vadd.f32 %v444, %v429
      %v446 = vadd.f32 %v445, %v430
      %v447 = vadd.f32 %v431, %v446
      %448 = vst [vmem:[#allocation2] sm:$0xff] %v447
      %p449 = scmp.eq.s32.totalorder %s21, 1
      // Predicated region
      $region45: #{transfer_learning_forward.1} parent=39 // pred_check
        %p450 = pneg %p449
      $region46: #{transfer_learning_forward.1} parent=39 // pred_check_branch
        %452 = sbr.rel (%p450) target = $region48
      $region47: #{transfer_learning_forward.1} parent=39 // pred_region
        %v453 = vld [vmem:[#allocation2] sm:$0xff]
        %v454 = vrot.slane %v453, 4
        %v455 = vadd.f32 %v453, %v454
        %v456 = vrot.slane %v455, 2
        %v457 = vadd.f32 %v455, %v456
        %v458 = vrot.slane %v457, 1
        %v459 = vadd.f32 %v457, %v458
        %v460 = vld [vmem:[%s3] sm:$0xff]
        %v461 = vld [vmem:[%s3 + $0x8] sm:$0xff]
        %v462 = vld [vmem:[%s3 + $0x10] sm:$0xff]
        %v463 = vld [vmem:[%s3 + $0x18] sm:$0xff]
        %v464 = vld [vmem:[%s3 + $0x20] sm:$0xff]
        %v465 = vld [vmem:[%s3 + $0x28] sm:$0xff]
        %v466 = vld [vmem:[%s3 + $0x30] sm:$0xff]
        %v467 = vld [vmem:[%s3 + $0x38] sm:$0xff]
        %v468 = vld [vmem:[%s3 + $0x40] sm:$0xff]
        %v469 = vld [vmem:[%s3 + $0x48] sm:$0xff]
        %v470 = vld [vmem:[%s3 + $0x50] sm:$0xff]
        %v471 = vld [vmem:[%s3 + $0x58] sm:$0xff]
        %v472 = vld [vmem:[%s3 + $0x60] sm:$0xff]
        %v473 = vld [vmem:[%s3 + $0x68] sm:$0xff]
        %v474 = vld [vmem:[%s3 + $0x70] sm:$0xff]
        %v475 = vld [vmem:[%s3 + $0x78] sm:$0xff]
        %v476 = vld [vmem:[%s4] sm:$0x1]
        %477 = vmatpush.msra.mxu0 %v475
        %478 = vmatpush.msra.mxu0 %v474
        %479 = vmatpush.msra.mxu0 %v473
        %480 = vmatpush.msra.mxu0 %v472
        %481 = vmatpush.msra.mxu0 %v471
        %482 = vmatpush.msra.mxu0 %v470
        %483 = vmatpush.msra.mxu0 %v469
        %484 = vmatpush.msra.mxu0 %v468
        %485 = vmatpush.msra.mxu0 %v467
        %486 = vmatpush.msra.mxu0 %v466
        %487 = vmatpush.msra.mxu0 %v465
        %488 = vmatpush.msra.mxu0 %v464
        %489 = vmatpush.msra.mxu0 %v463
        %490 = vmatpush.msra.mxu0 %v462
        %491 = vmatpush.msra.mxu0 %v461
        %492 = vmatpush.msra.mxu0 %v460
        %493 = vmatmul.f32.gmra.mxu0 %v459
        %v494 = vpop.f32.mrf.mxu0
        %v495 = vadd.f32 %v476, %v494
        %496 = vdwg.mxu0
        %v497 = vperm.slane %v495, 0
        %498 = vst [vmem:[%s250] sm:$0xff] %v497
      $region48: #{transfer_learning_forward.1} parent=39 // pred_fallthru
        _
      %p499 = scmp.lt.s32.totalorder %s20, 1
      %s500 = scalar_select %p499, %s20, 1
      %s501 = smul.addr %s500, 8
      %s502 = scalar_lea.vmem %s5, %s501
      // Predicated region
      $region49: #{transfer_learning_forward.1} parent=39 // pred_check
        %p503 = pneg %p158
      $region50: #{transfer_learning_forward.1} parent=39 // pred_check_branch
        %505 = sbr.rel (%p503) target = $region52
      $region51: #{transfer_learning_forward.1} parent=39 // pred_region
        _
      $region52: #{transfer_learning_forward.1} parent=39 // pred_fallthru
        _
    $region40: #{transfer_learning_forward.1} parent=5 // pred_fallthru
      _
    %p506 = scmp.le.s32.totalorder 2, %s11
    // Predicated region
    $region53: #{transfer_learning_forward.1} parent=5 // pred_check
      %p507 = pneg %p506
    $region54: #{transfer_learning_forward.1} parent=5 // pred_check_branch
      %509 = sbr.rel (%p507) target = $region56
    $region55: #{transfer_learning_forward.1} parent=5 // pred_region
      %s510 = ssub.s32 %s11, 2
      // Predicated region
      $region57: #{transfer_learning_forward.1} parent=55 // pred_check
        %p511 = pneg %p164
      $region58: #{transfer_learning_forward.1} parent=55 // pred_check_branch
        %513 = sbr.rel (%p511) target = $region60
      $region59: #{transfer_learning_forward.1} parent=55 // pred_region
        %p514 = scmp.lt.s32.totalorder %s22, 1
        %s515 = scalar_select %p514, %s22, 1
        %s516 = smul.addr %s515, 8
        %s517 = scalar_lea.vmem %s5, %s516
      $region60: #{transfer_learning_forward.1} parent=55 // pred_fallthru
        _
    $region56: #{transfer_learning_forward.1} parent=5 // pred_fallthru
      _
  $region6: #{transfer_learning_forward.1} parent=0 // loop_footer
    %s15 = sadd.s32 1, %s11
  $region7: #{transfer_learning_forward.1} parent=0 // loop_footer_branch
    %10 = sbr.rel target = $region3
  $region8: #{transfer_learning_forward.1} parent=0 // loop_exit
    _

</llo_original>
